<compile_context>
chip_gen: v7x
topology: tpu7x:2x2x1
jax: 0.10.0
libtpu: 0.0.40
codegen_flags: <defaults>
</compile_context>

<pallas_src>
import jax
import jax.numpy as jnp
from jax.experimental import pallas as pl
from jax.experimental.pallas import tpu as pltpu


# ---------------------------------------------------------------------------
# Kernel
# ---------------------------------------------------------------------------
def _bottleneck_kernel(x_ref, w1_ref, w2_ref, w3_ref, wd_ref, wu_ref,
                       b1_ref, b2_ref, b3_ref, out_ref):
    f32 = jnp.float32
    nb, lp, cinp = x_ref.shape           # cinp = F * Cin (lane-dense input width)
    rp = nb * lp
    md = w1_ref.dtype                    # MXU compute dtype (bf16 or f32)
    cp = w1_ref.shape[1]                 # F * planes
    c4p = w3_ref.shape[1]                # F * C4  (lane-dense output width)
    c4 = wd_ref.shape[1]                 # true channel count C4 = planes * 4
    F = c4p // c4                        # lane pack factor (L positions / 128 lanes)
    P = cp // F                          # planes
    L = lp * F                           # true sequence length

    x3 = x_ref[...]                                      # (nb, lp, F*Cin) f32
    xf = x3.reshape(rp, cinp)                             # free (lp % 8 == 0)

    # conv1 (1x1, BN1 scale folded into block-diag W1) + bias + ReLU.
    # Dropout(0.2) is identity in eval mode.
    h = jnp.dot(xf.astype(md), w1_ref[...], preferred_element_type=f32) + b1_ref[...]
    hc = jnp.maximum(h, 0.0).astype(md)                   # cast right after ReLU
    hc3 = hc.reshape(nb, lp, cp)                          # (nb, lp, F*P)

    # conv2 (k=3, pad=1, stride=1, BN2 folded) as ONE fused 3-tap matmul.
    # Position l = F*i + k lives in lane group k of row i, so the +-1 halo is
    # a lane-group shift plus one cross-row piece; both are built from static
    # slices + concats (no (L+2)-sublane pad), directly in the MXU dtype.
    if F > 1:
        zrow = jnp.zeros((nb, 1, P), md)
        nxt_g0 = jnp.concatenate([hc3[:, 1:, :P], zrow], axis=1)        # pos l+1, k = F-1
        prv_gl = jnp.concatenate([zrow, hc3[:, :-1, cp - P:]], axis=1)  # pos l-1, k = 0
        shift_p = jnp.concatenate([hc3[:, :, P:], nxt_g0], axis=2)      # h at l+1
        shift_m = jnp.concatenate([prv_gl, hc3[:, :, :cp - P]], axis=2)  # h at l-1
    else:
        zrow = jnp.zeros((nb, 1, cp), md)
        shift_p = jnp.concatenate([hc3[:, 1:, :], zrow], axis=1)
        shift_m = jnp.concatenate([zrow, hc3[:, :-1, :]], axis=1)
    lhs3 = jnp.concatenate([shift_m, hc3, shift_p], axis=2).reshape(rp, 3 * cp)

    h2 = jnp.dot(lhs3, w2_ref[...], preferred_element_type=f32) + b2_ref[...]
    h2 = jnp.maximum(h2, 0.0).astype(md)                  # (rp, F*P)

    # conv3 (1x1, BN3 folded): lane-dense output (F*C4 == 128 when C4 | 128).
    h3 = jnp.dot(h2, w3_ref[...], preferred_element_type=f32) + b3_ref[...]
    h3n = h3.reshape(nb, lp, c4p)                         # (nb, lp, F*C4) f32

    # SE branch, kept OFF the MXU (tiny K/N dots would serialize the MXU
    # result FIFO on v5e/v6e).  Global average pool over L, squeeze, ReLU,
    # excite, sigmoid -- all VPU/XLU work in f32.
    part = jnp.sum(h3n, axis=1)                           # (nb, F*C4)
    s = part[:, 0:c4]
    for k in range(1, F):
        s = s + part[:, k * c4:(k + 1) * c4]
    s = s * (1.0 / L)                                     # (nb, C4) pooled mean

    wdm = wd_ref[...]                                     # (D, C4) f32
    wum = wu_ref[...]                                     # (D, C4) f32
    su = jnp.zeros((nb, c4), f32)
    for d in range(wdm.shape[0]):                         # D = planes // 4, unrolled
        z = jnp.sum(s * wdm[d:d + 1, :], axis=-1, keepdims=True)   # (nb, 1)
        su = su + jnp.maximum(z, 0.0) * wum[d:d + 1, :]
    gate = jax.nn.sigmoid(su)                             # (nb, C4)
    if F > 1:
        gate = jnp.concatenate([gate] * F, axis=-1)       # (nb, F*C4)

    # Residual (downsample=None, stride=1) + final ReLU; lane-dense store.
    out_ref[...] = jnp.maximum(gate[:, None, :] * h3n + x3, 0.0)


# ---------------------------------------------------------------------------
# Parameter folding / packing
# ---------------------------------------------------------------------------
def _fold_bn(gamma, beta, mean, var, eps=1e-5):
    scale = gamma / jnp.sqrt(var + eps)
    bias = beta - mean * scale
    return scale[None, :], bias[None, :]


def make_params(conv1_w, conv2_w, conv3_w, convd_w, convu_w,
                bn1, bn2, bn3, *, compute_dtype=jnp.bfloat16, pack=None,
                eps=1e-5):
    """Fold BN scales into the conv weights, block-diagonal-pack them so F
    consecutive L positions share 128 lanes, and emit kernel-layout params.

    conv*_w are PyTorch-shaped (Cout, Cin, K); bn* are (gamma, beta, mean, var).
    MXU weights are cast to `compute_dtype`; SE weights and biases stay f32.
    Eval-mode semantics (running-stat BN, identity Dropout).
    """
    c4 = conv3_w.shape[0]
    if pack is None:
        pack = 128 // c4 if (c4 <= 128 and 128 % c4 == 0) else 1
    F = max(1, int(pack))

    s1, b1 = _fold_bn(*bn1, eps)
    s2, b2 = _fold_bn(*bn2, eps)
    s3, b3 = _fold_bn(*bn3, eps)
    eye_f = jnp.eye(F, dtype=jnp.float32)

    w1 = jnp.kron(eye_f, conv1_w[:, :, 0].T * s1)                 # (F*Cin, F*P)
    w2 = jnp.concatenate(
        [jnp.kron(eye_f, conv2_w[:, :, k].T * s2) for k in range(3)],
        axis=0)                                                   # (3*F*P, F*P)
    w3 = jnp.kron(eye_f, conv3_w[:, :, 0].T * s3)                 # (F*P, F*C4)
    wd = convd_w[:, :, 0]                                         # (D, C4)
    wu = convu_w[:, :, 0].T                                       # (D, C4)
    b1p = jnp.tile(b1, (1, F))                                    # (1, F*P)
    b2p = jnp.tile(b2, (1, F))                                    # (1, F*P)
    b3p = jnp.tile(b3, (1, F))                                    # (1, F*C4)

    cd = compute_dtype
    f32 = jnp.float32
    return (w1.astype(cd), w2.astype(cd), w3.astype(cd),
            wd.astype(f32), wu.astype(f32),
            b1p.astype(f32), b2p.astype(f32), b3p.astype(f32))


# ---------------------------------------------------------------------------
# Generation-aware sizing
# ---------------------------------------------------------------------------
def _tpu_hw_info():
    """(physical VMEM bytes, TensorCore count) with safe fallbacks."""
    vmem = 64 * 1024 * 1024
    try:
        v = int(pltpu.get_tpu_info().vmem_capacity_bytes)
        if 16 * 2**20 <= v <= 1024 * 2**20:
            vmem = v
    except Exception:
        pass
    num_tc = 1
    try:
        kind = jax.devices()[0].device_kind.lower()
        if any(t in kind for t in ("v4", "v5p", "v7", "7x")):
            num_tc = 2
    except Exception:
        pass
    return vmem, num_tc


def _pick_block_batch(N, L, cin, planes, c4, mm_bytes, num_tc, vmem_budget):
    """Samples per grid step: as many as fit the VMEM budget; only force
    multiple grid steps when the chip actually has multiple TensorCores."""
    per_sample = L * (8 * cin + 16 * c4 + 8 * planes
                      + mm_bytes * (cin + 7 * planes))
    per_sample = (3 * per_sample) // 2                    # 50% slack
    cap = max(1, vmem_budget // max(per_sample, 1))
    if num_tc > 1 and N >= num_tc:
        cap = min(cap, N // num_tc)
    nb = 1
    for d in range(1, N + 1):
        if N % d == 0 and d <= cap:
            nb = d
    return nb


# ---------------------------------------------------------------------------
# Wrapper
# ---------------------------------------------------------------------------
def se_bottleneck(x_nlc, params, *, block_batch=None):
    """x_nlc: (N, L, Cin) float32; params from make_params().

    Requires inplanes == planes*4 (downsample=None, stride=1) and
    L % (8 * pack) == 0 for the packed layout (rebuild params with
    make_params(pack=1) otherwise).  Eval-mode semantics only.
    """
    x_nlc = x_nlc.astype(jnp.float32)
    N, L, Cin = x_nlc.shape
    w1, w2, w3, wd, wu, b1, b2, b3 = params
    c4 = wd.shape[1]
    c4p = w3.shape[1]
    F = c4p // c4
    planes = w1.shape[1] // F
    assert Cin == c4, "residual add needs inplanes == planes*4 (downsample=None)"
    assert L % F == 0 and (L // F) % 8 == 0, \
        "L must be a multiple of 8*pack; rebuild params with make_params(pack=1)"
    lp = L // F

    vmem_phys, num_tc = _tpu_hw_info()
    vmem_limit = min(int(0.75 * vmem_phys), 96 * 1024 * 1024)
    weight_bytes = sum(int(a.size) * a.dtype.itemsize for a in params)
    budget = int(0.7 * vmem_limit) - 2 * weight_bytes
    mm_bytes = jnp.dtype(w1.dtype).itemsize

    if block_batch is None:
        block_batch = _pick_block_batch(N, L, Cin, planes, c4, mm_bytes,
                                        num_tc, budget)
    nb = block_batch
    assert N % nb == 0, "block_batch must divide N"

    # Byte-identical re-view: F consecutive L positions packed per 128 lanes.
    x_packed = x_nlc.reshape(N, lp, F * Cin)

    def _const_spec(a):
        nd = a.ndim
        return pl.BlockSpec(a.shape, lambda n, _nd=nd: (0,) * _nd)

    in_specs = ([pl.BlockSpec((nb, lp, F * Cin), lambda n: (n, 0, 0))]
                + [_const_spec(a) for a in params])
    out_spec = pl.BlockSpec((nb, lp, F * c4), lambda n: (n, 0, 0))

    out_packed = pl.pallas_call(
        _bottleneck_kernel,
        out_shape=jax.ShapeDtypeStruct((N, lp, F * c4), jnp.float32),
        grid_spec=pltpu.PrefetchScalarGridSpec(
            num_scalar_prefetch=0,
            grid=(N // nb,),
            in_specs=in_specs,
            out_specs=out_spec),
        compiler_params=pltpu.CompilerParams(
            dimension_semantics=("parallel",),
            vmem_limit_bytes=vmem_limit),
    )(x_packed, *params)

    return out_packed.reshape(N, L, c4)     # byte-identical re-view back to NLC


# ---------------------------------------------------------------------------
# Pure-JAX reference (straight f32 transcription of the PyTorch eval forward)
# ---------------------------------------------------------------------------
def _ref_forward_pytorch(x_nlc, conv1_w, conv2_w, conv3_w, convd_w, convu_w,
                         bn1, bn2, bn3, eps=1e-5):
    def bn(h, p):
        gamma, beta, mean, var = p
        return (h - mean) / jnp.sqrt(var + eps) * gamma + beta

    N, L, _ = x_nlc.shape
    h = jax.nn.relu(bn(jnp.einsum('nlc,pc->nlp', x_nlc, conv1_w[:, :, 0]), bn1))
    hp = jnp.pad(h, ((0, 0), (1, 1), (0, 0)))
    h2 = sum(jnp.einsum('nlp,qp->nlq', hp[:, k:k + L], conv2_w[:, :, k])
             for k in range(3))
    h2 = jax.nn.relu(bn(h2, bn2))
    h3 = bn(jnp.einsum('nlp,cp->nlc', h2, conv3_w[:, :, 0]), bn3)
    s = jnp.mean(h3, axis=1)
    sd = jax.nn.relu(jnp.einsum('nc,dc->nd', s, convd_w[:, :, 0]))
    gate = jax.nn.sigmoid(jnp.einsum('nd,cd->nc', sd, convu_w[:, :, 0]))
    return jax.nn.relu(gate[:, None, :] * h3 + x_nlc)


# ---------------------------------------------------------------------------
# Self-test
# ---------------------------------------------------------------------------
if __name__ == "__main__":
    # Small, self-consistent configuration: inplanes == planes * 4, stride=1.
    N, planes, L = 8, 8, 32
    inplanes = planes * 4                       # 32
    c4 = planes * 4                             # 32
    d_ch = planes // 4                          # 2

    key = jax.random.PRNGKey(0)
    ks = jax.random.split(key, 16)

    conv1_w = 0.1 * jax.random.normal(ks[0], (planes, inplanes, 1), jnp.float32)
    conv2_w = 0.1 * jax.random.normal(ks[1], (planes, planes, 3), jnp.float32)
    conv3_w = 0.1 * jax.random.normal(ks[2], (c4, planes, 1), jnp.float32)
    convd_w = 0.1 * jax.random.normal(ks[3], (d_ch, c4, 1), jnp.float32)
    convu_w = 0.1 * jax.random.normal(ks[4], (c4, d_ch, 1), jnp.float32)

    def bn_params(k, c):
        k1, k2, k3, k4 = jax.random.split(k, 4)
        gamma = 1.0 + 0.1 * jax.random.normal(k1, (c,), jnp.float32)
        beta = 0.1 * jax.random.normal(k2, (c,), jnp.float32)
        mean = 0.1 * jax.random.normal(k3, (c,), jnp.float32)
        var = 1.0 + 0.1 * jnp.abs(jax.random.normal(k4, (c,), jnp.float32))
        return gamma, beta, mean, var

    bn1 = bn_params(ks[5], planes)
    bn2 = bn_params(ks[6], planes)
    bn3 = bn_params(ks[7], c4)
    convs = (conv1_w, conv2_w, conv3_w, convd_w, convu_w)

    # PyTorch-layout input (N, C, L), transposed to NLC for the kernel.
    x_ncl = jax.random.normal(ks[8], (N, inplanes, L), jnp.float32)
    x_nlc = jnp.transpose(x_ncl, (0, 2, 1))

    ref = _ref_forward_pytorch(x_nlc, *convs, bn1, bn2, bn3)

    # f32 MXU path: tight check against the PyTorch-style reference.
    params_f32 = make_params(*convs, bn1, bn2, bn3, compute_dtype=jnp.float32)
    out_f32 = jax.block_until_ready(se_bottleneck(x_nlc, params_f32))
    assert out_f32.shape == (N, L, c4)
    assert jnp.allclose(out_f32, ref, atol=3e-3, rtol=3e-3), "f32 kernel mismatch"

    # bf16 MXU path (default; element-wise math stays f32).
    params_bf16 = make_params(*convs, bn1, bn2, bn3, compute_dtype=jnp.bfloat16)
    out_bf16 = jax.block_until_ready(se_bottleneck(x_nlc, params_bf16))
    assert jnp.allclose(out_bf16, out_f32, atol=6e-2, rtol=6e-2), "bf16 kernel mismatch"
    assert jnp.allclose(out_bf16, ref, atol=8e-2, rtol=8e-2), "bf16 vs reference mismatch"

    out_ncl = jnp.transpose(out_bf16, (0, 2, 1))        # back to PyTorch NCL
    assert out_ncl.shape == (N, inplanes, L)

    print("KERNEL_OK")
</pallas_src>

<mosaic_0001>
module attributes {stable_mosaic.version = 11 : i64} {
  func.func @_bottleneck_kernel(%arg0: i32, %arg1: memref<8x8x128xf32, #tpu.memory_space<vmem>>, %arg2: memref<128x32xf32, #tpu.memory_space<vmem>>, %arg3: memref<96x32xf32, #tpu.memory_space<vmem>>, %arg4: memref<32x128xf32, #tpu.memory_space<vmem>>, %arg5: memref<2x32xf32, #tpu.memory_space<vmem>>, %arg6: memref<2x32xf32, #tpu.memory_space<vmem>>, %arg7: memref<1x32xf32, #tpu.memory_space<vmem>>, %arg8: memref<1x32xf32, #tpu.memory_space<vmem>>, %arg9: memref<1x128xf32, #tpu.memory_space<vmem>>, %arg10: memref<8x8x128xf32, #tpu.memory_space<vmem>>) attributes {dimension_semantics = [#tpu.dimension_semantics<parallel>], iteration_bounds = array<i64: 1>, scalar_prefetch = 0 : i64, scratch_operands = 0 : i64, tpu.core_type = #tpu.core_type<tc>, window_params = [{transform_indices = @transform_0, window_bounds = array<i64: 8, 8, 128>}, {pipeline_mode = #tpu.pipeline_mode<synchronous>, transform_indices = @transform_1, window_bounds = array<i64: 128, 32>}, {pipeline_mode = #tpu.pipeline_mode<synchronous>, transform_indices = @transform_2, window_bounds = array<i64: 96, 32>}, {pipeline_mode = #tpu.pipeline_mode<synchronous>, transform_indices = @transform_3, window_bounds = array<i64: 32, 128>}, {pipeline_mode = #tpu.pipeline_mode<synchronous>, transform_indices = @transform_4, window_bounds = array<i64: 2, 32>}, {pipeline_mode = #tpu.pipeline_mode<synchronous>, transform_indices = @transform_5, window_bounds = array<i64: 2, 32>}, {pipeline_mode = #tpu.pipeline_mode<synchronous>, transform_indices = @transform_6, window_bounds = array<i64: 1, 32>}, {pipeline_mode = #tpu.pipeline_mode<synchronous>, transform_indices = @transform_7, window_bounds = array<i64: 1, 32>}, {pipeline_mode = #tpu.pipeline_mode<synchronous>, transform_indices = @transform_8, window_bounds = array<i64: 1, 128>}, {transform_indices = @transform_9, window_bounds = array<i64: 8, 8, 128>}]} {
    %c0 = arith.constant 0 : index
    %c0_0 = arith.constant 0 : index
    %c0_1 = arith.constant 0 : index
    %0 = vector.load %arg1[%c0, %c0_0, %c0_1] : memref<8x8x128xf32, #tpu.memory_space<vmem>>, vector<8x8x128xf32>
    %1 = vector.shape_cast %0 : vector<8x8x128xf32> to vector<64x128xf32>
    %c0_2 = arith.constant 0 : index
    %c0_3 = arith.constant 0 : index
    %2 = vector.load %arg2[%c0_2, %c0_3] : memref<128x32xf32, #tpu.memory_space<vmem>>, vector<128x32xf32>
    %cst = arith.constant dense<0.000000e+00> : vector<64x32xf32>
    %3 = tpu.matmul %1, %2, %cst {dimension_numbers = #tpu.dot_dimension_numbers<[1], [0], [0], [1], [0, 0, 1, 1], [], []>} : vector<64x128xf32>, vector<128x32xf32>, vector<64x32xf32> -> vector<64x32xf32>
    %c0_4 = arith.constant 0 : index
    %c0_5 = arith.constant 0 : index
    %4 = vector.load %arg7[%c0_4, %c0_5] : memref<1x32xf32, #tpu.memory_space<vmem>>, vector<1x32xf32>
    %5 = vector.broadcast %4 : vector<1x32xf32> to vector<64x32xf32>
    %6 = arith.addf %3, %5 : vector<64x32xf32>
    %cst_6 = arith.constant 0.000000e+00 : f32
    %7 = vector.broadcast %cst_6 : f32 to vector<64x32xf32>
    %8 = arith.maximumf %6, %7 : vector<64x32xf32>
    %9 = vector.shape_cast %8 : vector<64x32xf32> to vector<8x8x32xf32>
    %cst_7 = arith.constant 0.000000e+00 : f32
    %10 = vector.broadcast %cst_7 : f32 to vector<8x1x8xf32>
    %11 = vector.extract_strided_slice %9 {offsets = [0, 1, 0], sizes = [8, 7, 8], strides = [1, 1, 1]} : vector<8x8x32xf32> to vector<8x7x8xf32>
    %12 = tpu.concatenate %11, %10 in 1 : vector<8x7x8xf32>, vector<8x1x8xf32> -> vector<8x8x8xf32>
    %13 = vector.extract_strided_slice %9 {offsets = [0, 0, 24], sizes = [8, 7, 8], strides = [1, 1, 1]} : vector<8x8x32xf32> to vector<8x7x8xf32>
    %14 = tpu.concatenate %10, %13 in 1 : vector<8x1x8xf32>, vector<8x7x8xf32> -> vector<8x8x8xf32>
    %15 = vector.extract_strided_slice %9 {offsets = [0, 0, 8], sizes = [8, 8, 24], strides = [1, 1, 1]} : vector<8x8x32xf32> to vector<8x8x24xf32>
    %16 = tpu.concatenate %15, %12 in 2 : vector<8x8x24xf32>, vector<8x8x8xf32> -> vector<8x8x32xf32>
    %17 = vector.extract_strided_slice %9 {offsets = [0, 0, 0], sizes = [8, 8, 24], strides = [1, 1, 1]} : vector<8x8x32xf32> to vector<8x8x24xf32>
    %18 = tpu.concatenate %14, %17 in 2 : vector<8x8x8xf32>, vector<8x8x24xf32> -> vector<8x8x32xf32>
    %19 = tpu.concatenate %18, %9, %16 in 2 : vector<8x8x32xf32>, vector<8x8x32xf32>, vector<8x8x32xf32> -> vector<8x8x96xf32>
    %20 = vector.shape_cast %19 : vector<8x8x96xf32> to vector<64x96xf32>
    %c0_8 = arith.constant 0 : index
    %c0_9 = arith.constant 0 : index
    %21 = vector.load %arg3[%c0_8, %c0_9] : memref<96x32xf32, #tpu.memory_space<vmem>>, vector<96x32xf32>
    %cst_10 = arith.constant dense<0.000000e+00> : vector<64x32xf32>
    %22 = tpu.matmul %20, %21, %cst_10 {dimension_numbers = #tpu.dot_dimension_numbers<[1], [0], [0], [1], [0, 0, 1, 1], [], []>} : vector<64x96xf32>, vector<96x32xf32>, vector<64x32xf32> -> vector<64x32xf32>
    %c0_11 = arith.constant 0 : index
    %c0_12 = arith.constant 0 : index
    %23 = vector.load %arg8[%c0_11, %c0_12] : memref<1x32xf32, #tpu.memory_space<vmem>>, vector<1x32xf32>
    %24 = vector.broadcast %23 : vector<1x32xf32> to vector<64x32xf32>
    %25 = arith.addf %22, %24 : vector<64x32xf32>
    %cst_13 = arith.constant 0.000000e+00 : f32
    %26 = vector.broadcast %cst_13 : f32 to vector<64x32xf32>
    %27 = arith.maximumf %25, %26 : vector<64x32xf32>
    %c0_14 = arith.constant 0 : index
    %c0_15 = arith.constant 0 : index
    %28 = vector.load %arg4[%c0_14, %c0_15] : memref<32x128xf32, #tpu.memory_space<vmem>>, vector<32x128xf32>
    %cst_16 = arith.constant dense<0.000000e+00> : vector<64x128xf32>
    %29 = tpu.matmul %27, %28, %cst_16 {dimension_numbers = #tpu.dot_dimension_numbers<[1], [0], [0], [1], [0, 0, 1, 1], [], []>} : vector<64x32xf32>, vector<32x128xf32>, vector<64x128xf32> -> vector<64x128xf32>
    %c0_17 = arith.constant 0 : index
    %c0_18 = arith.constant 0 : index
    %30 = vector.load %arg9[%c0_17, %c0_18] : memref<1x128xf32, #tpu.memory_space<vmem>>, vector<1x128xf32>
    %31 = vector.broadcast %30 : vector<1x128xf32> to vector<64x128xf32>
    %32 = arith.addf %29, %31 : vector<64x128xf32>
    %33 = vector.shape_cast %32 : vector<64x128xf32> to vector<8x8x128xf32>
    %cst_19 = arith.constant dense<0.000000e+00> : vector<8x128xf32>
    %34 = vector.multi_reduction <add>, %33, %cst_19 [1] : vector<8x8x128xf32> to vector<8x128xf32>
    %35 = vector.extract_strided_slice %34 {offsets = [0, 0], sizes = [8, 32], strides = [1, 1]} : vector<8x128xf32> to vector<8x32xf32>
    %36 = vector.extract_strided_slice %34 {offsets = [0, 32], sizes = [8, 32], strides = [1, 1]} : vector<8x128xf32> to vector<8x32xf32>
    %37 = arith.addf %35, %36 : vector<8x32xf32>
    %38 = vector.extract_strided_slice %34 {offsets = [0, 64], sizes = [8, 32], strides = [1, 1]} : vector<8x128xf32> to vector<8x32xf32>
    %39 = arith.addf %37, %38 : vector<8x32xf32>
    %40 = vector.extract_strided_slice %34 {offsets = [0, 96], sizes = [8, 32], strides = [1, 1]} : vector<8x128xf32> to vector<8x32xf32>
    %41 = arith.addf %39, %40 : vector<8x32xf32>
    %cst_20 = arith.constant 3.125000e-02 : f32
    %42 = vector.broadcast %cst_20 : f32 to vector<8x32xf32>
    %43 = arith.mulf %41, %42 : vector<8x32xf32>
    %c0_21 = arith.constant 0 : index
    %c0_22 = arith.constant 0 : index
    %44 = vector.load %arg5[%c0_21, %c0_22] : memref<2x32xf32, #tpu.memory_space<vmem>>, vector<2x32xf32>
    %c0_23 = arith.constant 0 : index
    %c0_24 = arith.constant 0 : index
    %45 = vector.load %arg6[%c0_23, %c0_24] : memref<2x32xf32, #tpu.memory_space<vmem>>, vector<2x32xf32>
    %cst_25 = arith.constant 0.000000e+00 : f32
    %46 = vector.broadcast %cst_25 : f32 to vector<8x32xf32>
    %47 = vector.extract_strided_slice %44 {offsets = [0, 0], sizes = [1, 32], strides = [1, 1]} : vector<2x32xf32> to vector<1x32xf32>
    %48 = vector.broadcast %47 : vector<1x32xf32> to vector<8x32xf32>
    %49 = arith.mulf %43, %48 : vector<8x32xf32>
    %cst_26 = arith.constant dense<0.000000e+00> : vector<8xf32>
    %50 = vector.multi_reduction <add>, %49, %cst_26 [1] : vector<8x32xf32> to vector<8xf32>
    %51 = vector.shape_cast %50 : vector<8xf32> to vector<8x1xf32>
    %cst_27 = arith.constant 0.000000e+00 : f32
    %52 = vector.broadcast %cst_27 : f32 to vector<8x1xf32>
    %53 = arith.maximumf %51, %52 : vector<8x1xf32>
    %54 = vector.extract_strided_slice %45 {offsets = [0, 0], sizes = [1, 32], strides = [1, 1]} : vector<2x32xf32> to vector<1x32xf32>
    %55 = vector.broadcast %53 : vector<8x1xf32> to vector<8x32xf32>
    %56 = vector.broadcast %54 : vector<1x32xf32> to vector<8x32xf32>
    %57 = arith.mulf %55, %56 : vector<8x32xf32>
    %58 = arith.addf %46, %57 : vector<8x32xf32>
    %59 = vector.extract_strided_slice %44 {offsets = [1, 0], sizes = [1, 32], strides = [1, 1]} : vector<2x32xf32> to vector<1x32xf32>
    %60 = vector.broadcast %59 : vector<1x32xf32> to vector<8x32xf32>
    %61 = arith.mulf %43, %60 : vector<8x32xf32>
    %cst_28 = arith.constant dense<0.000000e+00> : vector<8xf32>
    %62 = vector.multi_reduction <add>, %61, %cst_28 [1] : vector<8x32xf32> to vector<8xf32>
    %63 = vector.shape_cast %62 : vector<8xf32> to vector<8x1xf32>
    %cst_29 = arith.constant 0.000000e+00 : f32
    %64 = vector.broadcast %cst_29 : f32 to vector<8x1xf32>
    %65 = arith.maximumf %63, %64 : vector<8x1xf32>
    %66 = vector.extract_strided_slice %45 {offsets = [1, 0], sizes = [1, 32], strides = [1, 1]} : vector<2x32xf32> to vector<1x32xf32>
    %67 = vector.broadcast %65 : vector<8x1xf32> to vector<8x32xf32>
    %68 = vector.broadcast %66 : vector<1x32xf32> to vector<8x32xf32>
    %69 = arith.mulf %67, %68 : vector<8x32xf32>
    %70 = arith.addf %58, %69 : vector<8x32xf32>
    %71 = arith.negf %70 : vector<8x32xf32>
    %72 = math.exp %71 : vector<8x32xf32>
    %cst_30 = arith.constant 1.000000e+00 : f32
    %73 = vector.broadcast %cst_30 : f32 to vector<8x32xf32>
    %74 = arith.addf %73, %72 : vector<8x32xf32>
    %75 = arith.divf %73, %74 : vector<8x32xf32>
    %76 = tpu.concatenate %75, %75, %75, %75 in 1 : vector<8x32xf32>, vector<8x32xf32>, vector<8x32xf32>, vector<8x32xf32> -> vector<8x128xf32>
    %77 = vector.shape_cast %76 : vector<8x128xf32> to vector<8x1x128xf32>
    %78 = vector.broadcast %77 : vector<8x1x128xf32> to vector<8x8x128xf32>
    %79 = arith.mulf %78, %33 : vector<8x8x128xf32>
    %80 = arith.addf %79, %0 : vector<8x8x128xf32>
    %cst_31 = arith.constant 0.000000e+00 : f32
    %81 = vector.broadcast %cst_31 : f32 to vector<8x8x128xf32>
    %82 = arith.maximumf %80, %81 : vector<8x8x128xf32>
    %c0_32 = arith.constant 0 : index
    %c0_33 = arith.constant 0 : index
    %c0_34 = arith.constant 0 : index
    %83 = vector.load %arg10[%c0_32, %c0_33, %c0_34] : memref<8x8x128xf32, #tpu.memory_space<vmem>>, vector<8x8x128xf32>
    tpu.vector_store %arg10[%c0_32, %c0_33, %c0_34], %82 {strides = array<i32>} : memref<8x8x128xf32, #tpu.memory_space<vmem>>, vector<8x8x128xf32>,
    return
  }
  func.func @transform_0(%arg0: i32) -> (i32, i32, i32) {
    %c0_i32 = arith.constant 0 : i32
    %c0_i32_0 = arith.constant 0 : i32
    %c0_i32_1 = arith.constant 0 : i32
    return %arg0, %c0_i32, %c0_i32_0 : i32, i32, i32
  }
  func.func @transform_1(%arg0: i32) -> (i32, i32) {
    %c0_i32 = arith.constant 0 : i32
    %c0_i32_0 = arith.constant 0 : i32
    %c0_i32_1 = arith.constant 0 : i32
    return %c0_i32, %c0_i32_0 : i32, i32
  }
  func.func @transform_2(%arg0: i32) -> (i32, i32) {
    %c0_i32 = arith.constant 0 : i32
    %c0_i32_0 = arith.constant 0 : i32
    %c0_i32_1 = arith.constant 0 : i32
    return %c0_i32, %c0_i32_0 : i32, i32
  }
  func.func @transform_3(%arg0: i32) -> (i32, i32) {
    %c0_i32 = arith.constant 0 : i32
    %c0_i32_0 = arith.constant 0 : i32
    %c0_i32_1 = arith.constant 0 : i32
    return %c0_i32, %c0_i32_0 : i32, i32
  }
  func.func @transform_4(%arg0: i32) -> (i32, i32) {
    %c0_i32 = arith.constant 0 : i32
    %c0_i32_0 = arith.constant 0 : i32
    %c0_i32_1 = arith.constant 0 : i32
    return %c0_i32, %c0_i32_0 : i32, i32
  }
  func.func @transform_5(%arg0: i32) -> (i32, i32) {
    %c0_i32 = arith.constant 0 : i32
    %c0_i32_0 = arith.constant 0 : i32
    %c0_i32_1 = arith.constant 0 : i32
    return %c0_i32, %c0_i32_0 : i32, i32
  }
  func.func @transform_6(%arg0: i32) -> (i32, i32) {
    %c0_i32 = arith.constant 0 : i32
    %c0_i32_0 = arith.constant 0 : i32
    %c0_i32_1 = arith.constant 0 : i32
    return %c0_i32, %c0_i32_0 : i32, i32
  }
  func.func @transform_7(%arg0: i32) -> (i32, i32) {
    %c0_i32 = arith.constant 0 : i32
    %c0_i32_0 = arith.constant 0 : i32
    %c0_i32_1 = arith.constant 0 : i32
    return %c0_i32, %c0_i32_0 : i32, i32
  }
  func.func @transform_8(%arg0: i32) -> (i32, i32) {
    %c0_i32 = arith.constant 0 : i32
    %c0_i32_0 = arith.constant 0 : i32
    %c0_i32_1 = arith.constant 0 : i32
    return %c0_i32, %c0_i32_0 : i32, i32
  }
  func.func @transform_9(%arg0: i32) -> (i32, i32, i32) {
    %c0_i32 = arith.constant 0 : i32
    %c0_i32_0 = arith.constant 0 : i32
    %c0_i32_1 = arith.constant 0 : i32
    return %arg0, %c0_i32, %c0_i32_0 : i32, i32, i32
  }
}

</mosaic_0001>

<llo_original>
// kernel: tpu_custom_call.1
$region0: #{tpu_custom_call.1}
  #allocation0 [shape = 'u32[]', space=smem, size = 0x4, offset = 0x4, fixed_abs, tag = 'smem constant byte address 0x4 - core index']
  #allocation1 [shape = 'u32[144,128]{1,0:T(1,128)}', space=vmem, size = 0x12000, scoped, tag = 'internal scratch']
  %s0 = inlined_call_operand.vmem [shape: f32[8,8,128], index: 0, kind: input, shape index: {}]
  %s1 = inlined_call_operand.vmem [shape: f32[128,32], index: 1, kind: input, shape index: {}]
  %s2 = inlined_call_operand.vmem [shape: f32[96,32], index: 2, kind: input, shape index: {}]
  %s3 = inlined_call_operand.vmem [shape: f32[32,128], index: 3, kind: input, shape index: {}]
  %s4 = inlined_call_operand.vmem [shape: f32[2,32], index: 4, kind: input, shape index: {}]
  %s5 = inlined_call_operand.vmem [shape: f32[2,32], index: 5, kind: input, shape index: {}]
  %s6 = inlined_call_operand.vmem [shape: f32[1,32], index: 6, kind: input, shape index: {}]
  %s7 = inlined_call_operand.vmem [shape: f32[1,32], index: 7, kind: input, shape index: {}]
  %s8 = inlined_call_operand.vmem [shape: f32[1,128], index: 8, kind: input, shape index: {}]
  %s9 = inlined_call_operand.hbm [shape: f32[8,8,128], index: 9, kind: output, shape index: {}]
  %s10 = sld [smem:[#allocation0]]
  $region46: #{tpu_custom_call.1} parent=0
    _
  %s12 = ssub.s32 1, %s10
  %s13 = scalar_select 0, %s12, %s10
  $region1: #{tpu_custom_call.1} parent=0
    #allocation2 [shape = 'u8[32768]{0}', space=vmem, size = 0x8000, scoped, tag = 'output window, operand 0, single buffered']
    #allocation3 [shape = 's32[1]{0}', space=sflag, size = 0x4, scoped, tag = 'scoped memory for tpu_custom_call.1']
    %14 = vsyncpa [#allocation3], 0
    // Predicated region
    $region2: #{tpu_custom_call.1} parent=1 // pred_check
      _
    $region3: #{tpu_custom_call.1} parent=1 // pred_check_branch
      %16 = sbr.rel (0) target = $region5
    $region4: #{tpu_custom_call.1} parent=1 // pred_region
      _
    $region5: #{tpu_custom_call.1} parent=1 // pred_fallthru
      _
    // Predicated region
    $region6: #{tpu_custom_call.1} parent=1 // pred_check
      _
    $region7: #{tpu_custom_call.1} parent=1 // pred_check_branch
      %18 = sbr.rel (0) target = $region9
    $region8: #{tpu_custom_call.1} parent=1 // pred_region
      _
    $region9: #{tpu_custom_call.1} parent=1 // pred_fallthru
      _
    // Predicated region
    $region10: #{tpu_custom_call.1} parent=1 // pred_check
      _
    $region11: #{tpu_custom_call.1} parent=1 // pred_check_branch
      %20 = sbr.rel (0) target = $region13
    $region12: #{tpu_custom_call.1} parent=1 // pred_region
      _
    $region13: #{tpu_custom_call.1} parent=1 // pred_fallthru
      _
    // Predicated region
    $region14: #{tpu_custom_call.1} parent=1 // pred_check
      _
    $region15: #{tpu_custom_call.1} parent=1 // pred_check_branch
      %22 = sbr.rel (0) target = $region17
    $region16: #{tpu_custom_call.1} parent=1 // pred_region
      _
    $region17: #{tpu_custom_call.1} parent=1 // pred_fallthru
      _
    // Predicated region
    $region18: #{tpu_custom_call.1} parent=1 // pred_check
      _
    $region19: #{tpu_custom_call.1} parent=1 // pred_check_branch
      %24 = sbr.rel (0) target = $region21
    $region20: #{tpu_custom_call.1} parent=1 // pred_region
      _
    $region21: #{tpu_custom_call.1} parent=1 // pred_fallthru
      _
    // Predicated region
    $region22: #{tpu_custom_call.1} parent=1 // pred_check
      _
    $region23: #{tpu_custom_call.1} parent=1 // pred_check_branch
      %26 = sbr.rel (0) target = $region25
    $region24: #{tpu_custom_call.1} parent=1 // pred_region
      _
    $region25: #{tpu_custom_call.1} parent=1 // pred_fallthru
      _
    // Predicated region
    $region26: #{tpu_custom_call.1} parent=1 // pred_check
      _
    $region27: #{tpu_custom_call.1} parent=1 // pred_check_branch
      %28 = sbr.rel (0) target = $region29
    $region28: #{tpu_custom_call.1} parent=1 // pred_region
      _
    $region29: #{tpu_custom_call.1} parent=1 // pred_fallthru
      _
    // Predicated region
    $region30: #{tpu_custom_call.1} parent=1 // pred_check
      _
    $region31: #{tpu_custom_call.1} parent=1 // pred_check_branch
      %30 = sbr.rel (0) target = $region33
    $region32: #{tpu_custom_call.1} parent=1 // pred_region
      _
    $region33: #{tpu_custom_call.1} parent=1 // pred_fallthru
      _
    // Predicated region
    $region34: #{tpu_custom_call.1} parent=1 // pred_check
      _
    $region35: #{tpu_custom_call.1} parent=1 // pred_check_branch
      %32 = sbr.rel (0) target = $region37
    $region36: #{tpu_custom_call.1} parent=1 // pred_region
      _
    $region37: #{tpu_custom_call.1} parent=1 // pred_fallthru
      _
    %v33 = vld [vmem:[%s0] sm:$0xff]
    %v34 = vld [vmem:[%s0 + $0x8] sm:$0xff]
    %v35 = vld [vmem:[%s0 + $0x10] sm:$0xff]
    %v36 = vld [vmem:[%s0 + $0x18] sm:$0xff]
    %v37 = vld [vmem:[%s0 + $0x20] sm:$0xff]
    %v38 = vld [vmem:[%s0 + $0x28] sm:$0xff]
    %v39 = vld [vmem:[%s0 + $0x30] sm:$0xff]
    %v40 = vld [vmem:[%s0 + $0x38] sm:$0xff]
    %v41 = vld [vmem:[%s1] sm:$0xff]
    %v42 = vld [vmem:[%s1 + $0x8] sm:$0xff]
    %v43 = vld [vmem:[%s1 + $0x10] sm:$0xff]
    %v44 = vld [vmem:[%s1 + $0x18] sm:$0xff]
    %v45 = vld [vmem:[%s1 + $0x20] sm:$0xff]
    %v46 = vld [vmem:[%s1 + $0x28] sm:$0xff]
    %v47 = vld [vmem:[%s1 + $0x30] sm:$0xff]
    %v48 = vld [vmem:[%s1 + $0x38] sm:$0xff]
    %v49 = vld [vmem:[%s1 + $0x40] sm:$0xff]
    %v50 = vld [vmem:[%s1 + $0x48] sm:$0xff]
    %v51 = vld [vmem:[%s1 + $0x50] sm:$0xff]
    %v52 = vld [vmem:[%s1 + $0x58] sm:$0xff]
    %v53 = vld [vmem:[%s1 + $0x60] sm:$0xff]
    %v54 = vld [vmem:[%s1 + $0x68] sm:$0xff]
    %v55 = vld [vmem:[%s1 + $0x70] sm:$0xff]
    %v56 = vld [vmem:[%s1 + $0x78] sm:$0xff]
    %v57 = vld [vmem:[%s6] sm:$0x1]
    %v59 = vlaneseq
    %v60 = vshrl.u32 %v59, 7
    %v61 = vsub.s32 0, %v60
    %v62 = vrot.slane %v57, %v61
    %64 = vmatprep.subr.mxu0 0.0
    %65 = vmatpush1.msra.mxu0 %v41
    %66 = vmatprep.subr.mxu0 0.0
    %67 = vmatpush1.msra.mxu0 %v42
    %68 = vmatprep.subr.mxu0 0.0
    %69 = vmatpush1.msra.mxu0 %v43
    %70 = vmatprep.subr.mxu0 0.0
    %71 = vmatpush1.msra.mxu0 %v44
    %72 = vmatprep.subr.mxu0 0.0
    %73 = vmatpush1.msra.mxu0 %v45
    %74 = vmatprep.subr.mxu0 0.0
    %75 = vmatpush1.msra.mxu0 %v46
    %76 = vmatprep.subr.mxu0 0.0
    %77 = vmatpush1.msra.mxu0 %v47
    %78 = vmatprep.subr.mxu0 0.0
    %79 = vmatpush1.msra.mxu0 %v48
    %80 = vmatprep.subr.mxu0 0.0
    %81 = vmatpush1.msra.mxu0 %v49
    %82 = vmatprep.subr.mxu0 0.0
    %83 = vmatpush1.msra.mxu0 %v50
    %84 = vmatprep.subr.mxu0 0.0
    %85 = vmatpush1.msra.mxu0 %v51
    %86 = vmatprep.subr.mxu0 0.0
    %87 = vmatpush1.msra.mxu0 %v52
    %88 = vmatprep.subr.mxu0 0.0
    %89 = vmatpush1.msra.mxu0 %v53
    %90 = vmatprep.subr.mxu0 0.0
    %91 = vmatpush1.msra.mxu0 %v54
    %92 = vmatprep.subr.mxu0 0.0
    %93 = vmatpush1.msra.mxu0 %v55
    %94 = vmatprep.subr.mxu0 0.0
    %95 = vmatpush1.msra.mxu0 %v56
    %96 = vmatprep.subr.mxu0 0.0
    %97 = vmatpush1.msra.mxu0 0.0
    %98 = vmatprep.subr.mxu0 0.0
    %99 = vmatpush1.msra.mxu0 0.0
    %100 = vmatprep.subr.mxu0 0.0
    %101 = vmatpush1.msra.mxu0 0.0
    %102 = vmatprep.subr.mxu0 0.0
    %103 = vmatpush1.msra.mxu0 0.0
    %104 = vmatprep.subr.mxu0 0.0
    %105 = vmatpush1.msra.mxu0 0.0
    %106 = vmatprep.subr.mxu0 0.0
    %107 = vmatpush1.msra.mxu0 0.0
    %108 = vmatprep.subr.mxu0 0.0
    %109 = vmatpush1.msra.mxu0 0.0
    %110 = vmatprep.subr.mxu0 0.0
    %111 = vmatpush1.msra.mxu0 0.0
    %112 = vmatprep.subr.mxu0 0.0
    %113 = vmatpush1.msra.mxu0 0.0
    %114 = vmatprep.subr.mxu0 0.0
    %115 = vmatpush1.msra.mxu0 0.0
    %116 = vmatprep.subr.mxu0 0.0
    %117 = vmatpush1.msra.mxu0 0.0
    %118 = vmatprep.subr.mxu0 0.0
    %119 = vmatpush1.msra.mxu0 0.0
    %120 = vmatprep.subr.mxu0 0.0
    %121 = vmatpush1.msra.mxu0 0.0
    %122 = vmatprep.subr.mxu0 0.0
    %123 = vmatpush1.msra.mxu0 0.0
    %124 = vmatprep.subr.mxu0 0.0
    %125 = vmatpush1.msra.mxu0 0.0
    %126 = vmatprep.subr.mxu0 0.0
    %127 = vmatpush1.msra.mxu0 0.0
    %128 = vmatprep.mubr.f32.mxu0 0.0
    %129 = vmatmul.mubr.f32.gmra.mrb[0].mxu0 %v33
    %v130 = vpop.f32.mrb[0].mxu0
    %v131 = vadd.f32 %v62, %v130
    %v132 = vpop.f32.mrb[0].mxu0
    %133 = vmatprep.mubr.f32.mxu0 0.0
    %134 = vmatmul.mubr.f32.gmra.mrb[0].mxu0 %v34
    %v135 = vpop.f32.mrb[0].mxu0
    %v136 = vadd.f32 %v62, %v135
    %v137 = vpop.f32.mrb[0].mxu0
    %138 = vmatprep.mubr.f32.mxu0 0.0
    %139 = vmatmul.mubr.f32.gmra.mrb[0].mxu0 %v35
    %v140 = vpop.f32.mrb[0].mxu0
    %v141 = vadd.f32 %v62, %v140
    %v142 = vpop.f32.mrb[0].mxu0
    %143 = vmatprep.mubr.f32.mxu0 0.0
    %144 = vmatmul.mubr.f32.gmra.mrb[0].mxu0 %v36
    %v145 = vpop.f32.mrb[0].mxu0
    %v146 = vadd.f32 %v62, %v145
    %v147 = vpop.f32.mrb[0].mxu0
    %148 = vmatprep.mubr.f32.mxu0 0.0
    %149 = vmatmul.mubr.f32.gmra.mrb[0].mxu0 %v37
    %v150 = vpop.f32.mrb[0].mxu0
    %v151 = vadd.f32 %v62, %v150
    %v152 = vpop.f32.mrb[0].mxu0
    %153 = vmatprep.mubr.f32.mxu0 0.0
    %154 = vmatmul.mubr.f32.gmra.mrb[0].mxu0 %v38
    %v155 = vpop.f32.mrb[0].mxu0
    %v156 = vadd.f32 %v62, %v155
    %v157 = vpop.f32.mrb[0].mxu0
    %158 = vmatprep.mubr.f32.mxu0 0.0
    %159 = vmatmul.mubr.f32.gmra.mrb[0].mxu0 %v39
    %v160 = vpop.f32.mrb[0].mxu0
    %v161 = vadd.f32 %v62, %v160
    %v162 = vpop.f32.mrb[0].mxu0
    %163 = vmatprep.mubr.f32.mxu0 0.0
    %164 = vmatmul.mubr.f32.gmra.mrb[0].mxu0 %v40
    %v165 = vpop.f32.mrb[0].mxu0
    %v166 = vadd.f32 %v62, %v165
    %v167 = vpop.f32.mrb[0].mxu0
    %168 = vdwg.mxu0
    %v169 = vmax.f32 %v131, 0.0
    %v170 = vmax.f32 %v136, 0.0
    %v171 = vmax.f32 %v141, 0.0
    %v172 = vmax.f32 %v146, 0.0
    %v173 = vmax.f32 %v151, 0.0
    %v174 = vmax.f32 %v156, 0.0
    %v175 = vmax.f32 %v161, 0.0
    %v176 = vmax.f32 %v166, 0.0
    %v185 = vrot.slane %v169, 1
    %v186 = vrot.slane %v170, 1
    %v187 = vrot.slane %v171, 1
    %v188 = vrot.slane %v172, 1
    %v189 = vrot.slane %v173, 1
    %v190 = vrot.slane %v174, 1
    %v191 = vrot.slane %v175, 1
    %v192 = vrot.slane %v176, 1
    %vm201 = vcmask 1046528
    %v202 = vsel %vm201, %v185, 0.0
    %v203 = vsel %vm201, %v186, 0.0
    %v204 = vsel %vm201, %v187, 0.0
    %v205 = vsel %vm201, %v188, 0.0
    %v206 = vsel %vm201, %v189, 0.0
    %v207 = vsel %vm201, %v190, 0.0
    %v208 = vsel %vm201, %v191, 0.0
    %v209 = vsel %vm201, %v192, 0.0
    %v210 = vrot.slane %v169, 7
    %v211 = vrot.slane %v170, 7
    %v212 = vrot.slane %v171, 7
    %v213 = vrot.slane %v172, 7
    %v214 = vrot.slane %v173, 7
    %v215 = vrot.slane %v174, 7
    %v216 = vrot.slane %v175, 7
    %v217 = vrot.slane %v176, 7
    %218 = vrot.lane.b32.xlu0 %v210, 104
    %v219 = vpop.permute.xlu0 %218
    %220 = vrot.lane.b32.xlu0 %v211, 104
    %v221 = vpop.permute.xlu0 %220
    %222 = vrot.lane.b32.xlu0 %v212, 104
    %v223 = vpop.permute.xlu0 %222
    %224 = vrot.lane.b32.xlu0 %v213, 104
    %v225 = vpop.permute.xlu0 %224
    %226 = vrot.lane.b32.xlu0 %v214, 104
    %v227 = vpop.permute.xlu0 %226
    %228 = vrot.lane.b32.xlu0 %v215, 104
    %v229 = vpop.permute.xlu0 %228
    %230 = vrot.lane.b32.xlu0 %v216, 104
    %v231 = vpop.permute.xlu0 %230
    %232 = vrot.lane.b32.xlu0 %v217, 104
    %v233 = vpop.permute.xlu0 %232
    %vm242 = vcmask 1040384
    %v243 = vsel %vm242, 0.0, %v219
    %v244 = vsel %vm242, 0.0, %v221
    %v245 = vsel %vm242, 0.0, %v223
    %v246 = vsel %vm242, 0.0, %v225
    %v247 = vsel %vm242, 0.0, %v227
    %v248 = vsel %vm242, 0.0, %v229
    %v249 = vsel %vm242, 0.0, %v231
    %v250 = vsel %vm242, 0.0, %v233
    %251 = vrot.lane.b32.xlu0 %v169, 120
    %v252 = vpop.permute.xlu0 %251
    %253 = vrot.lane.b32.xlu0 %v170, 120
    %v254 = vpop.permute.xlu0 %253
    %255 = vrot.lane.b32.xlu0 %v171, 120
    %v256 = vpop.permute.xlu0 %255
    %257 = vrot.lane.b32.xlu0 %v172, 120
    %v258 = vpop.permute.xlu0 %257
    %259 = vrot.lane.b32.xlu0 %v173, 120
    %v260 = vpop.permute.xlu0 %259
    %261 = vrot.lane.b32.xlu0 %v174, 120
    %v262 = vpop.permute.xlu0 %261
    %263 = vrot.lane.b32.xlu0 %v175, 120
    %v264 = vpop.permute.xlu0 %263
    %265 = vrot.lane.b32.xlu0 %v176, 120
    %v266 = vpop.permute.xlu0 %265
    %283 = vrot.lane.b32.xlu0 %v202, 24
    %v284 = vpop.permute.xlu0 %283
    %285 = vrot.lane.b32.xlu0 %v203, 24
    %v286 = vpop.permute.xlu0 %285
    %287 = vrot.lane.b32.xlu0 %v204, 24
    %v288 = vpop.permute.xlu0 %287
    %289 = vrot.lane.b32.xlu0 %v205, 24
    %v290 = vpop.permute.xlu0 %289
    %291 = vrot.lane.b32.xlu0 %v206, 24
    %v292 = vpop.permute.xlu0 %291
    %293 = vrot.lane.b32.xlu0 %v207, 24
    %v294 = vpop.permute.xlu0 %293
    %295 = vrot.lane.b32.xlu0 %v208, 24
    %v296 = vpop.permute.xlu0 %295
    %297 = vrot.lane.b32.xlu0 %v209, 24
    %v298 = vpop.permute.xlu0 %297
    %vm307 = vcmask 195584
    %v308 = vsel %vm307, %v252, %v284
    %v309 = vsel %vm307, %v254, %v286
    %v310 = vsel %vm307, %v256, %v288
    %v311 = vsel %vm307, %v258, %v290
    %v312 = vsel %vm307, %v260, %v292
    %v313 = vsel %vm307, %v262, %v294
    %v314 = vsel %vm307, %v264, %v296
    %v315 = vsel %vm307, %v266, %v298
    %316 = vrot.lane.b32.xlu0 %v169, 8
    %v317 = vpop.permute.xlu0 %316
    %318 = vrot.lane.b32.xlu0 %v170, 8
    %v319 = vpop.permute.xlu0 %318
    %320 = vrot.lane.b32.xlu0 %v171, 8
    %v321 = vpop.permute.xlu0 %320
    %322 = vrot.lane.b32.xlu0 %v172, 8
    %v323 = vpop.permute.xlu0 %322
    %324 = vrot.lane.b32.xlu0 %v173, 8
    %v325 = vpop.permute.xlu0 %324
    %326 = vrot.lane.b32.xlu0 %v174, 8
    %v327 = vpop.permute.xlu0 %326
    %328 = vrot.lane.b32.xlu0 %v175, 8
    %v329 = vpop.permute.xlu0 %328
    %330 = vrot.lane.b32.xlu0 %v176, 8
    %v331 = vpop.permute.xlu0 %330
    %vm340 = vcmask 64512
    %v341 = vsel %vm340, %v243, %v317
    %v342 = vsel %vm340, %v244, %v319
    %v343 = vsel %vm340, %v245, %v321
    %v344 = vsel %vm340, %v246, %v323
    %v345 = vsel %vm340, %v247, %v325
    %v346 = vsel %vm340, %v248, %v327
    %v347 = vsel %vm340, %v249, %v329
    %v348 = vsel %vm340, %v250, %v331
    %349 = vrot.lane.b32.xlu0 %v169, 32
    %v350 = vpop.permute.xlu0 %349
    %351 = vrot.lane.b32.xlu0 %v170, 32
    %v352 = vpop.permute.xlu0 %351
    %353 = vrot.lane.b32.xlu0 %v171, 32
    %v354 = vpop.permute.xlu0 %353
    %355 = vrot.lane.b32.xlu0 %v172, 32
    %v356 = vpop.permute.xlu0 %355
    %357 = vrot.lane.b32.xlu0 %v173, 32
    %v358 = vpop.permute.xlu0 %357
    %359 = vrot.lane.b32.xlu0 %v174, 32
    %v360 = vpop.permute.xlu0 %359
    %361 = vrot.lane.b32.xlu0 %v175, 32
    %v362 = vpop.permute.xlu0 %361
    %363 = vrot.lane.b32.xlu0 %v176, 32
    %v364 = vpop.permute.xlu0 %363
    %381 = vrot.lane.b32.xlu0 %v308, 64
    %v382 = vpop.permute.xlu0 %381
    %383 = vrot.lane.b32.xlu0 %v309, 64
    %v384 = vpop.permute.xlu0 %383
    %385 = vrot.lane.b32.xlu0 %v310, 64
    %v386 = vpop.permute.xlu0 %385
    %387 = vrot.lane.b32.xlu0 %v311, 64
    %v388 = vpop.permute.xlu0 %387
    %389 = vrot.lane.b32.xlu0 %v312, 64
    %v390 = vpop.permute.xlu0 %389
    %391 = vrot.lane.b32.xlu0 %v313, 64
    %v392 = vpop.permute.xlu0 %391
    %393 = vrot.lane.b32.xlu0 %v314, 64
    %v394 = vpop.permute.xlu0 %393
    %395 = vrot.lane.b32.xlu0 %v315, 64
    %v396 = vpop.permute.xlu0 %395
    %vm405 = vcmask 261120
    %v406 = vsel %vm405, %v341, %v350
    %v407 = vsel %vm405, %v342, %v352
    %v408 = vsel %vm405, %v343, %v354
    %v409 = vsel %vm405, %v344, %v356
    %v410 = vsel %vm405, %v345, %v358
    %v411 = vsel %vm405, %v346, %v360
    %v412 = vsel %vm405, %v347, %v362
    %v413 = vsel %vm405, %v348, %v364
    %vm414 = vcmask 523264
    %v415 = vsel %vm414, %v406, %v382
    %v416 = vsel %vm414, %v407, %v384
    %v417 = vsel %vm414, %v408, %v386
    %v418 = vsel %vm414, %v409, %v388
    %v419 = vsel %vm414, %v410, %v390
    %v420 = vsel %vm414, %v411, %v392
    %v421 = vsel %vm414, %v412, %v394
    %v422 = vsel %vm414, %v413, %v396
    %v423 = vld [vmem:[%s2] sm:$0xff]
    %v424 = vld [vmem:[%s2 + $0x8] sm:$0xff]
    %v425 = vld [vmem:[%s2 + $0x10] sm:$0xff]
    %v426 = vld [vmem:[%s2 + $0x18] sm:$0xff]
    %v427 = vld [vmem:[%s2 + $0x20] sm:$0xff]
    %v428 = vld [vmem:[%s2 + $0x28] sm:$0xff]
    %v429 = vld [vmem:[%s2 + $0x30] sm:$0xff]
    %v430 = vld [vmem:[%s2 + $0x38] sm:$0xff]
    %v431 = vld [vmem:[%s2 + $0x40] sm:$0xff]
    %v432 = vld [vmem:[%s2 + $0x48] sm:$0xff]
    %v433 = vld [vmem:[%s2 + $0x50] sm:$0xff]
    %v434 = vld [vmem:[%s2 + $0x58] sm:$0xff]
    %v435 = vld [vmem:[%s7] sm:$0x1]
    %v437 = vlaneseq
    %v438 = vshrl.u32 %v437, 7
    %v439 = vsub.s32 0, %v438
    %v440 = vrot.slane %v435, %v439
    %vm442 = vcmask 785408
    %v444 = vsel %vm442, %v415, 0
    %v447 = vsel %vm442, %v416, 0
    %v450 = vsel %vm442, %v417, 0
    %v453 = vsel %vm442, %v418, 0
    %v456 = vsel %vm442, %v419, 0
    %v459 = vsel %vm442, %v420, 0
    %v462 = vsel %vm442, %v421, 0
    %v465 = vsel %vm442, %v422, 0
    %467 = vmatprep.subr.mxu0 0.0
    %468 = vmatpush1.msra.mxu0 %v423
    %469 = vmatprep.subr.mxu0 0.0
    %470 = vmatpush1.msra.mxu0 %v424
    %471 = vmatprep.subr.mxu0 0.0
    %472 = vmatpush1.msra.mxu0 %v425
    %473 = vmatprep.subr.mxu0 0.0
    %474 = vmatpush1.msra.mxu0 %v426
    %475 = vmatprep.subr.mxu0 0.0
    %476 = vmatpush1.msra.mxu0 %v427
    %477 = vmatprep.subr.mxu0 0.0
    %478 = vmatpush1.msra.mxu0 %v428
    %479 = vmatprep.subr.mxu0 0.0
    %480 = vmatpush1.msra.mxu0 %v429
    %481 = vmatprep.subr.mxu0 0.0
    %482 = vmatpush1.msra.mxu0 %v430
    %483 = vmatprep.subr.mxu0 0.0
    %484 = vmatpush1.msra.mxu0 %v431
    %485 = vmatprep.subr.mxu0 0.0
    %486 = vmatpush1.msra.mxu0 %v432
    %487 = vmatprep.subr.mxu0 0.0
    %488 = vmatpush1.msra.mxu0 %v433
    %489 = vmatprep.subr.mxu0 0.0
    %490 = vmatpush1.msra.mxu0 %v434
    %491 = vmatprep.subr.mxu0 0.0
    %492 = vmatpush1.msra.mxu0 0.0
    %493 = vmatprep.subr.mxu0 0.0
    %494 = vmatpush1.msra.mxu0 0.0
    %495 = vmatprep.subr.mxu0 0.0
    %496 = vmatpush1.msra.mxu0 0.0
    %497 = vmatprep.subr.mxu0 0.0
    %498 = vmatpush1.msra.mxu0 0.0
    %499 = vmatprep.subr.mxu0 0.0
    %500 = vmatpush1.msra.mxu0 0.0
    %501 = vmatprep.subr.mxu0 0.0
    %502 = vmatpush1.msra.mxu0 0.0
    %503 = vmatprep.subr.mxu0 0.0
    %504 = vmatpush1.msra.mxu0 0.0
    %505 = vmatprep.subr.mxu0 0.0
    %506 = vmatpush1.msra.mxu0 0.0
    %507 = vmatprep.subr.mxu0 0.0
    %508 = vmatpush1.msra.mxu0 0.0
    %509 = vmatprep.subr.mxu0 0.0
    %510 = vmatpush1.msra.mxu0 0.0
    %511 = vmatprep.subr.mxu0 0.0
    %512 = vmatpush1.msra.mxu0 0.0
    %513 = vmatprep.subr.mxu0 0.0
    %514 = vmatpush1.msra.mxu0 0.0
    %515 = vmatprep.subr.mxu0 0.0
    %516 = vmatpush1.msra.mxu0 0.0
    %517 = vmatprep.subr.mxu0 0.0
    %518 = vmatpush1.msra.mxu0 0.0
    %519 = vmatprep.subr.mxu0 0.0
    %520 = vmatpush1.msra.mxu0 0.0
    %521 = vmatprep.subr.mxu0 0.0
    %522 = vmatpush1.msra.mxu0 0.0
    %523 = vmatprep.subr.mxu0 0.0
    %524 = vmatpush1.msra.mxu0 0.0
    %525 = vmatprep.subr.mxu0 0.0
    %526 = vmatpush1.msra.mxu0 0.0
    %527 = vmatprep.subr.mxu0 0.0
    %528 = vmatpush1.msra.mxu0 0.0
    %529 = vmatprep.subr.mxu0 0.0
    %530 = vmatpush1.msra.mxu0 0.0
    %531 = vmatprep.mubr.f32.mxu0 0.0
    %532 = vmatmul.mubr.f32.gmra.mrb[0].mxu0 %v444
    %v533 = vpop.f32.mrb[0].mxu0
    %v534 = vadd.f32 %v440, %v533
    %v535 = vpop.f32.mrb[0].mxu0
    %536 = vmatprep.mubr.f32.mxu0 0.0
    %537 = vmatmul.mubr.f32.gmra.mrb[0].mxu0 %v447
    %v538 = vpop.f32.mrb[0].mxu0
    %v539 = vadd.f32 %v440, %v538
    %v540 = vpop.f32.mrb[0].mxu0
    %541 = vmatprep.mubr.f32.mxu0 0.0
    %542 = vmatmul.mubr.f32.gmra.mrb[0].mxu0 %v450
    %v543 = vpop.f32.mrb[0].mxu0
    %v544 = vadd.f32 %v440, %v543
    %v545 = vpop.f32.mrb[0].mxu0
    %546 = vmatprep.mubr.f32.mxu0 0.0
    %547 = vmatmul.mubr.f32.gmra.mrb[0].mxu0 %v453
    %v548 = vpop.f32.mrb[0].mxu0
    %v549 = vadd.f32 %v440, %v548
    %v550 = vpop.f32.mrb[0].mxu0
    %551 = vmatprep.mubr.f32.mxu0 0.0
    %552 = vmatmul.mubr.f32.gmra.mrb[0].mxu0 %v456
    %v553 = vpop.f32.mrb[0].mxu0
    %v554 = vadd.f32 %v440, %v553
    %v555 = vpop.f32.mrb[0].mxu0
    %556 = vmatprep.mubr.f32.mxu0 0.0
    %557 = vmatmul.mubr.f32.gmra.mrb[0].mxu0 %v459
    %v558 = vpop.f32.mrb[0].mxu0
    %v559 = vadd.f32 %v440, %v558
    %v560 = vpop.f32.mrb[0].mxu0
    %561 = vmatprep.mubr.f32.mxu0 0.0
    %562 = vmatmul.mubr.f32.gmra.mrb[0].mxu0 %v462
    %v563 = vpop.f32.mrb[0].mxu0
    %v564 = vadd.f32 %v440, %v563
    %v565 = vpop.f32.mrb[0].mxu0
    %566 = vmatprep.mubr.f32.mxu0 0.0
    %567 = vmatmul.mubr.f32.gmra.mrb[0].mxu0 %v465
    %v568 = vpop.f32.mrb[0].mxu0
    %v569 = vadd.f32 %v440, %v568
    %v570 = vpop.f32.mrb[0].mxu0
    %571 = vdwg.mxu0
    %v572 = vmax.f32 %v534, 0.0
    %v573 = vmax.f32 %v539, 0.0
    %v574 = vmax.f32 %v544, 0.0
    %v575 = vmax.f32 %v549, 0.0
    %v576 = vmax.f32 %v554, 0.0
    %v577 = vmax.f32 %v559, 0.0
    %v578 = vmax.f32 %v564, 0.0
    %v579 = vmax.f32 %v569, 0.0
    %v580 = vld [vmem:[%s3] sm:$0xff]
    %v581 = vld [vmem:[%s3 + $0x8] sm:$0xff]
    %v582 = vld [vmem:[%s3 + $0x10] sm:$0xff]
    %v583 = vld [vmem:[%s3 + $0x18] sm:$0xff]
    %v584 = vld [vmem:[%s8] sm:$0x1]
    %v586 = vlaneseq
    %v587 = vshrl.u32 %v586, 7
    %v588 = vsub.s32 0, %v587
    %v589 = vrot.slane %v584, %v588
    %v592 = vsel %vm405, %v572, 0
    %v595 = vsel %vm405, %v573, 0
    %v598 = vsel %vm405, %v574, 0
    %v601 = vsel %vm405, %v575, 0
    %v604 = vsel %vm405, %v576, 0
    %v607 = vsel %vm405, %v577, 0
    %v610 = vsel %vm405, %v578, 0
    %v613 = vsel %vm405, %v579, 0
    %615 = vmatprep.subr.mxu0 0.0
    %616 = vmatpush1.msra.mxu0 %v580
    %617 = vmatprep.subr.mxu0 0.0
    %618 = vmatpush1.msra.mxu0 %v581
    %619 = vmatprep.subr.mxu0 0.0
    %620 = vmatpush1.msra.mxu0 %v582
    %621 = vmatprep.subr.mxu0 0.0
    %622 = vmatpush1.msra.mxu0 %v583
    %623 = vmatprep.subr.mxu0 0.0
    %624 = vmatpush1.msra.mxu0 0.0
    %625 = vmatprep.subr.mxu0 0.0
    %626 = vmatpush1.msra.mxu0 0.0
    %627 = vmatprep.subr.mxu0 0.0
    %628 = vmatpush1.msra.mxu0 0.0
    %629 = vmatprep.subr.mxu0 0.0
    %630 = vmatpush1.msra.mxu0 0.0
    %631 = vmatprep.subr.mxu0 0.0
    %632 = vmatpush1.msra.mxu0 0.0
    %633 = vmatprep.subr.mxu0 0.0
    %634 = vmatpush1.msra.mxu0 0.0
    %635 = vmatprep.subr.mxu0 0.0
    %636 = vmatpush1.msra.mxu0 0.0
    %637 = vmatprep.subr.mxu0 0.0
    %638 = vmatpush1.msra.mxu0 0.0
    %639 = vmatprep.subr.mxu0 0.0
    %640 = vmatpush1.msra.mxu0 0.0
    %641 = vmatprep.subr.mxu0 0.0
    %642 = vmatpush1.msra.mxu0 0.0
    %643 = vmatprep.subr.mxu0 0.0
    %644 = vmatpush1.msra.mxu0 0.0
    %645 = vmatprep.subr.mxu0 0.0
    %646 = vmatpush1.msra.mxu0 0.0
    %647 = vmatprep.subr.mxu0 0.0
    %648 = vmatpush1.msra.mxu0 0.0
    %649 = vmatprep.subr.mxu0 0.0
    %650 = vmatpush1.msra.mxu0 0.0
    %651 = vmatprep.subr.mxu0 0.0
    %652 = vmatpush1.msra.mxu0 0.0
    %653 = vmatprep.subr.mxu0 0.0
    %654 = vmatpush1.msra.mxu0 0.0
    %655 = vmatprep.subr.mxu0 0.0
    %656 = vmatpush1.msra.mxu0 0.0
    %657 = vmatprep.subr.mxu0 0.0
    %658 = vmatpush1.msra.mxu0 0.0
    %659 = vmatprep.subr.mxu0 0.0
    %660 = vmatpush1.msra.mxu0 0.0
    %661 = vmatprep.subr.mxu0 0.0
    %662 = vmatpush1.msra.mxu0 0.0
    %663 = vmatprep.subr.mxu0 0.0
    %664 = vmatpush1.msra.mxu0 0.0
    %665 = vmatprep.subr.mxu0 0.0
    %666 = vmatpush1.msra.mxu0 0.0
    %667 = vmatprep.subr.mxu0 0.0
    %668 = vmatpush1.msra.mxu0 0.0
    %669 = vmatprep.subr.mxu0 0.0
    %670 = vmatpush1.msra.mxu0 0.0
    %671 = vmatprep.subr.mxu0 0.0
    %672 = vmatpush1.msra.mxu0 0.0
    %673 = vmatprep.subr.mxu0 0.0
    %674 = vmatpush1.msra.mxu0 0.0
    %675 = vmatprep.subr.mxu0 0.0
    %676 = vmatpush1.msra.mxu0 0.0
    %677 = vmatprep.subr.mxu0 0.0
    %678 = vmatpush1.msra.mxu0 0.0
    %679 = vmatprep.mubr.f32.mxu0 0.0
    %680 = vmatmul.mubr.f32.gmra.mrb[0].mxu0 %v592
    %v681 = vpop.f32.mrb[0].mxu0
    %v682 = vadd.f32 %v589, %v681
    %v683 = vpop.f32.mrb[0].mxu0
    %684 = vmatprep.mubr.f32.mxu0 0.0
    %685 = vmatmul.mubr.f32.gmra.mrb[0].mxu0 %v595
    %v686 = vpop.f32.mrb[0].mxu0
    %v687 = vadd.f32 %v589, %v686
    %v688 = vpop.f32.mrb[0].mxu0
    %689 = vmatprep.mubr.f32.mxu0 0.0
    %690 = vmatmul.mubr.f32.gmra.mrb[0].mxu0 %v598
    %v691 = vpop.f32.mrb[0].mxu0
    %v692 = vadd.f32 %v589, %v691
    %v693 = vpop.f32.mrb[0].mxu0
    %694 = vmatprep.mubr.f32.mxu0 0.0
    %695 = vmatmul.mubr.f32.gmra.mrb[0].mxu0 %v601
    %v696 = vpop.f32.mrb[0].mxu0
    %v697 = vadd.f32 %v589, %v696
    %v698 = vpop.f32.mrb[0].mxu0
    %699 = vmatprep.mubr.f32.mxu0 0.0
    %700 = vmatmul.mubr.f32.gmra.mrb[0].mxu0 %v604
    %v701 = vpop.f32.mrb[0].mxu0
    %v702 = vadd.f32 %v589, %v701
    %v703 = vpop.f32.mrb[0].mxu0
    %704 = vmatprep.mubr.f32.mxu0 0.0
    %705 = vmatmul.mubr.f32.gmra.mrb[0].mxu0 %v607
    %v706 = vpop.f32.mrb[0].mxu0
    %v707 = vadd.f32 %v589, %v706
    %v708 = vpop.f32.mrb[0].mxu0
    %709 = vmatprep.mubr.f32.mxu0 0.0
    %710 = vmatmul.mubr.f32.gmra.mrb[0].mxu0 %v610
    %v711 = vpop.f32.mrb[0].mxu0
    %v712 = vadd.f32 %v589, %v711
    %v713 = vpop.f32.mrb[0].mxu0
    %714 = vmatprep.mubr.f32.mxu0 0.0
    %715 = vmatmul.mubr.f32.gmra.mrb[0].mxu0 %v613
    %v716 = vpop.f32.mrb[0].mxu0
    %v717 = vadd.f32 %v589, %v716
    %v718 = vpop.f32.mrb[0].mxu0
    %719 = vdwg.mxu0
    %v720 = vrot.slane %v682, 4
    %v721 = vadd.f32 %v682, %v720
    %v722 = vrot.slane %v721, 2
    %v723 = vadd.f32 %v721, %v722
    %v724 = vrot.slane %v723, 1
    %v725 = vadd.f32 %v723, %v724
    %v726 = vrot.slane %v687, 4
    %v727 = vadd.f32 %v687, %v726
    %v728 = vrot.slane %v727, 2
    %v729 = vadd.f32 %v727, %v728
    %v730 = vrot.slane %v729, 1
    %v731 = vadd.f32 %v729, %v730
    %v732 = vrot.slane %v692, 4
    %v733 = vadd.f32 %v692, %v732
    %v734 = vrot.slane %v733, 2
    %v735 = vadd.f32 %v733, %v734
    %v736 = vrot.slane %v735, 1
    %v737 = vadd.f32 %v735, %v736
    %v738 = vrot.slane %v697, 4
    %v739 = vadd.f32 %v697, %v738
    %v740 = vrot.slane %v739, 2
    %v741 = vadd.f32 %v739, %v740
    %v742 = vrot.slane %v741, 1
    %v743 = vadd.f32 %v741, %v742
    %v744 = vrot.slane %v702, 4
    %v745 = vadd.f32 %v702, %v744
    %v746 = vrot.slane %v745, 2
    %v747 = vadd.f32 %v745, %v746
    %v748 = vrot.slane %v747, 1
    %v749 = vadd.f32 %v747, %v748
    %v750 = vrot.slane %v707, 4
    %v751 = vadd.f32 %v707, %v750
    %v752 = vrot.slane %v751, 2
    %v753 = vadd.f32 %v751, %v752
    %v754 = vrot.slane %v753, 1
    %v755 = vadd.f32 %v753, %v754
    %v756 = vrot.slane %v712, 4
    %v757 = vadd.f32 %v712, %v756
    %v758 = vrot.slane %v757, 2
    %v759 = vadd.f32 %v757, %v758
    %v760 = vrot.slane %v759, 1
    %v761 = vadd.f32 %v759, %v760
    %v762 = vrot.slane %v717, 4
    %v763 = vadd.f32 %v717, %v762
    %v764 = vrot.slane %v763, 2
    %v765 = vadd.f32 %v763, %v764
    %v766 = vrot.slane %v765, 1
    %v767 = vadd.f32 %v765, %v766
    %776 = vrot.lane.b32.xlu0 %v725, 96
    %v777 = vpop.permute.xlu0 %776
    %778 = vrot.lane.b32.xlu0 %v731, 96
    %v779 = vpop.permute.xlu0 %778
    %780 = vrot.lane.b32.xlu0 %v737, 96
    %v781 = vpop.permute.xlu0 %780
    %782 = vrot.lane.b32.xlu0 %v743, 96
    %v783 = vpop.permute.xlu0 %782
    %784 = vrot.lane.b32.xlu0 %v749, 96
    %v785 = vpop.permute.xlu0 %784
    %786 = vrot.lane.b32.xlu0 %v755, 96
    %v787 = vpop.permute.xlu0 %786
    %788 = vrot.lane.b32.xlu0 %v761, 96
    %v789 = vpop.permute.xlu0 %788
    %790 = vrot.lane.b32.xlu0 %v767, 96
    %v791 = vpop.permute.xlu0 %790
    %v800 = vadd.f32 %v725, %v777
    %v801 = vadd.f32 %v731, %v779
    %v802 = vadd.f32 %v737, %v781
    %v803 = vadd.f32 %v743, %v783
    %v804 = vadd.f32 %v749, %v785
    %v805 = vadd.f32 %v755, %v787
    %v806 = vadd.f32 %v761, %v789
    %v807 = vadd.f32 %v767, %v791
    %808 = vrot.lane.b32.xlu0 %v725, 64
    %v809 = vpop.permute.xlu0 %808
    %810 = vrot.lane.b32.xlu0 %v731, 64
    %v811 = vpop.permute.xlu0 %810
    %812 = vrot.lane.b32.xlu0 %v737, 64
    %v813 = vpop.permute.xlu0 %812
    %814 = vrot.lane.b32.xlu0 %v743, 64
    %v815 = vpop.permute.xlu0 %814
    %816 = vrot.lane.b32.xlu0 %v749, 64
    %v817 = vpop.permute.xlu0 %816
    %818 = vrot.lane.b32.xlu0 %v755, 64
    %v819 = vpop.permute.xlu0 %818
    %820 = vrot.lane.b32.xlu0 %v761, 64
    %v821 = vpop.permute.xlu0 %820
    %822 = vrot.lane.b32.xlu0 %v767, 64
    %v823 = vpop.permute.xlu0 %822
    %v832 = vadd.f32 %v800, %v809
    %v833 = vadd.f32 %v801, %v811
    %v834 = vadd.f32 %v802, %v813
    %v835 = vadd.f32 %v803, %v815
    %v836 = vadd.f32 %v804, %v817
    %v837 = vadd.f32 %v805, %v819
    %v838 = vadd.f32 %v806, %v821
    %v839 = vadd.f32 %v807, %v823
    %840 = vrot.lane.b32.xlu0 %v725, 32
    %v841 = vpop.permute.xlu0 %840
    %842 = vrot.lane.b32.xlu0 %v731, 32
    %v843 = vpop.permute.xlu0 %842
    %844 = vrot.lane.b32.xlu0 %v737, 32
    %v845 = vpop.permute.xlu0 %844
    %846 = vrot.lane.b32.xlu0 %v743, 32
    %v847 = vpop.permute.xlu0 %846
    %848 = vrot.lane.b32.xlu0 %v749, 32
    %v849 = vpop.permute.xlu0 %848
    %850 = vrot.lane.b32.xlu0 %v755, 32
    %v851 = vpop.permute.xlu0 %850
    %852 = vrot.lane.b32.xlu0 %v761, 32
    %v853 = vpop.permute.xlu0 %852
    %854 = vrot.lane.b32.xlu0 %v767, 32
    %v855 = vpop.permute.xlu0 %854
    %v864 = vadd.f32 %v832, %v841
    %v865 = vadd.f32 %v833, %v843
    %v866 = vadd.f32 %v834, %v845
    %v867 = vadd.f32 %v835, %v847
    %v868 = vadd.f32 %v836, %v849
    %v869 = vadd.f32 %v837, %v851
    %v870 = vadd.f32 %v838, %v853
    %v871 = vadd.f32 %v839, %v855
    %v872 = vmul.f32 %v864, 0.03125
    %v873 = vmul.f32 %v865, 0.03125
    %v874 = vmul.f32 %v866, 0.03125
    %v875 = vmul.f32 %v867, 0.03125
    %v876 = vmul.f32 %v868, 0.03125
    %v877 = vmul.f32 %v869, 0.03125
    %v878 = vmul.f32 %v870, 0.03125
    %v879 = vmul.f32 %v871, 0.03125
    %v880 = vld [vmem:[%s4] sm:$0x3]
    %v881 = vld [vmem:[%s5] sm:$0x3]
    %v882 = vlaneseq
    %v883 = vshrl.u32 %v882, 7
    %v884 = vsub.s32 0, %v883
    %v885 = vrot.slane %v880, %v884
    %v886 = vmul.f32 %v872, %v885
    %v887 = vmul.f32 %v873, %v885
    %v888 = vmul.f32 %v874, %v885
    %v889 = vmul.f32 %v875, %v885
    %v890 = vmul.f32 %v876, %v885
    %v891 = vmul.f32 %v877, %v885
    %v892 = vmul.f32 %v878, %v885
    %v893 = vmul.f32 %v879, %v885
    %v902 = vrot.slane %v887, 7
    %vm903 = vcmask 1041409
    %v904 = vsel %vm903, %v902, %v886
    %v905 = vrot.slane %v888, 6
    %vm906 = vcmask 1042434
    %v907 = vsel %vm906, %v905, %v904
    %v908 = vrot.slane %v889, 5
    %vm909 = vcmask 1043459
    %v910 = vsel %vm909, %v908, %v907
    %v911 = vrot.slane %v890, 4
    %vm912 = vcmask 1044484
    %v913 = vsel %vm912, %v911, %v910
    %v914 = vrot.slane %v891, 3
    %vm915 = vcmask 1045509
    %v916 = vsel %vm915, %v914, %v913
    %v917 = vrot.slane %v892, 2
    %vm918 = vcmask 1046534
    %v919 = vsel %vm918, %v917, %v916
    %v920 = vrot.slane %v893, 1
    %vm921 = vcmask 1047559
    %v922 = vsel %vm921, %v920, %v919
    %v924 = vsel %vm405, %v922, 0.0
    %925 = vadd.xlane.f32.xlu0 %v924
    %v926 = vpop.xlane.xlu0 %925
    %v927 = vmax.f32 %v926, 0.0
    %v928 = vlaneseq
    %v929 = vshrl.u32 %v928, 7
    %v930 = vsub.s32 0, %v929
    %v931 = vrot.slane %v881, %v930
    %v932 = vmul.f32 %v927, %v931
    %v933 = vadd.f32 %v932, 0.0
    %v934 = vlaneseq
    %v935 = vshrl.u32 %v934, 7
    %v936 = vsub.s32 1, %v935
    %v937 = vrot.slane %v880, %v936
    %v938 = vmul.f32 %v872, %v937
    %v939 = vmul.f32 %v873, %v937
    %v940 = vmul.f32 %v874, %v937
    %v941 = vmul.f32 %v875, %v937
    %v942 = vmul.f32 %v876, %v937
    %v943 = vmul.f32 %v877, %v937
    %v944 = vmul.f32 %v878, %v937
    %v945 = vmul.f32 %v879, %v937
    %v954 = vrot.slane %v939, 7
    %v955 = vsel %vm903, %v954, %v938
    %v956 = vrot.slane %v940, 6
    %v957 = vsel %vm906, %v956, %v955
    %v958 = vrot.slane %v941, 5
    %v959 = vsel %vm909, %v958, %v957
    %v960 = vrot.slane %v942, 4
    %v961 = vsel %vm912, %v960, %v959
    %v962 = vrot.slane %v943, 3
    %v963 = vsel %vm915, %v962, %v961
    %v964 = vrot.slane %v944, 2
    %v965 = vsel %vm918, %v964, %v963
    %v966 = vrot.slane %v945, 1
    %v967 = vsel %vm921, %v966, %v965
    %v969 = vsel %vm405, %v967, 0.0
    %970 = vadd.xlane.f32.xlu0 %v969
    %v971 = vpop.xlane.xlu0 %970
    %v972 = vmax.f32 %v971, 0.0
    %v973 = vlaneseq
    %v974 = vshrl.u32 %v973, 7
    %v975 = vsub.s32 1, %v974
    %v976 = vrot.slane %v881, %v975
    %v977 = vmul.f32 %v972, %v976
    %v978 = vadd.f32 %v933, %v977
    %v979 = vxor.u32 %v978, 2147483648
    %v980 = vmul.f32 %v979, 1.442695
    %v981 = vpow.pop %v980
    %v982 = vadd.f32 %v981, 1.0
    %v983 = vrcp.pop %v982
    %v984 = vmul.f32 1.0, %v983
    %986 = vrot.lane.b32.xlu0 %v984, 32
    %v987 = vpop.permute.xlu0 %986
    %989 = vrot.lane.b32.xlu0 %v984, 64
    %v990 = vpop.permute.xlu0 %989
    %992 = vrot.lane.b32.xlu0 %v984, 96
    %v993 = vpop.permute.xlu0 %992
    %v995 = vsel %vm405, %v984, %v987
    %v996 = vsel %vm414, %v995, %v990
    %v997 = vsel %vm442, %v996, %v993
    %v999 = vcombine.high %v997, %v997
    %v1001 = vunpack.c.l.s4 1966171168
    %v1002 = vunpack.c.0.s8 %v1001
    %v1003 = vlaneseq
    %v1004 = vshrl.u32 %v1003, 7
    %v1005 = vsub.s32 %v1002, %v1004
    %v1006 = vrot.slane %v997, %v1005
    %v1008 = vunpack.c.l.s4 1966171168
    %v1009 = vunpack.c.0.s8 %v1008
    %v1010 = vlaneseq
    %v1011 = vshrl.u32 %v1010, 7
    %v1012 = vsub.s32 %v1009, %v1011
    %v1013 = vrot.slane %v999, %v1012
    %v1014 = vcombine.high %v1006, %v1006
    %v1015 = vcombine.high %v1013, %v1013
    %v1017 = vunpack.c.l.s4 1966171168
    %v1018 = vunpack.c.0.s8 %v1017
    %v1019 = vlaneseq
    %v1020 = vshrl.u32 %v1019, 7
    %v1021 = vsub.s32 %v1018, %v1020
    %v1022 = vrot.slane %v1006, %v1021
    %v1024 = vunpack.c.l.s4 1966171168
    %v1025 = vunpack.c.0.s8 %v1024
    %v1026 = vlaneseq
    %v1027 = vshrl.u32 %v1026, 7
    %v1028 = vsub.s32 %v1025, %v1027
    %v1029 = vrot.slane %v1013, %v1028
    %v1031 = vunpack.c.l.s4 1966171168
    %v1032 = vunpack.c.0.s8 %v1031
    %v1033 = vlaneseq
    %v1034 = vshrl.u32 %v1033, 7
    %v1035 = vsub.s32 %v1032, %v1034
    %v1036 = vrot.slane %v1014, %v1035
    %v1038 = vunpack.c.l.s4 1966171168
    %v1039 = vunpack.c.0.s8 %v1038
    %v1040 = vlaneseq
    %v1041 = vshrl.u32 %v1040, 7
    %v1042 = vsub.s32 %v1039, %v1041
    %v1043 = vrot.slane %v1015, %v1042
    %v1044 = vcombine.high %v1022, %v1022
    %v1045 = vcombine.high %v1029, %v1029
    %v1046 = vcombine.high %v1036, %v1036
    %v1047 = vcombine.high %v1043, %v1043
    %v1048 = vlaneseq
    %v1049 = vshrl.u32 %v1048, 7
    %v1050 = vsub.s32 0, %v1049
    %v1051 = vrot.slane %v1022, %v1050
    %v1052 = vlaneseq
    %v1053 = vshrl.u32 %v1052, 7
    %v1054 = vsub.s32 0, %v1053
    %v1055 = vrot.slane %v1036, %v1054
    %v1056 = vlaneseq
    %v1057 = vshrl.u32 %v1056, 7
    %v1058 = vsub.s32 0, %v1057
    %v1059 = vrot.slane %v1044, %v1058
    %v1060 = vlaneseq
    %v1061 = vshrl.u32 %v1060, 7
    %v1062 = vsub.s32 0, %v1061
    %v1063 = vrot.slane %v1046, %v1062
    %v1064 = vlaneseq
    %v1065 = vshrl.u32 %v1064, 7
    %v1066 = vsub.s32 0, %v1065
    %v1067 = vrot.slane %v1029, %v1066
    %v1068 = vlaneseq
    %v1069 = vshrl.u32 %v1068, 7
    %v1070 = vsub.s32 0, %v1069
    %v1071 = vrot.slane %v1043, %v1070
    %v1072 = vlaneseq
    %v1073 = vshrl.u32 %v1072, 7
    %v1074 = vsub.s32 0, %v1073
    %v1075 = vrot.slane %v1045, %v1074
    %v1076 = vlaneseq
    %v1077 = vshrl.u32 %v1076, 7
    %v1078 = vsub.s32 0, %v1077
    %v1079 = vrot.slane %v1047, %v1078
    %v1088 = vmul.f32 %v1051, %v682
    %v1089 = vmul.f32 %v1055, %v687
    %v1090 = vmul.f32 %v1059, %v692
    %v1091 = vmul.f32 %v1063, %v697
    %v1092 = vmul.f32 %v1067, %v702
    %v1093 = vmul.f32 %v1071, %v707
    %v1094 = vmul.f32 %v1075, %v712
    %v1095 = vmul.f32 %v1079, %v717
    %v1096 = vadd.f32 %v1088, %v33
    %v1097 = vadd.f32 %v1089, %v34
    %v1098 = vadd.f32 %v1090, %v35
    %v1099 = vadd.f32 %v1091, %v36
    %v1100 = vadd.f32 %v1092, %v37
    %v1101 = vadd.f32 %v1093, %v38
    %v1102 = vadd.f32 %v1094, %v39
    %v1103 = vadd.f32 %v1095, %v40
    %v1104 = vmax.f32 %v1096, 0.0
    %v1105 = vmax.f32 %v1097, 0.0
    %v1106 = vmax.f32 %v1098, 0.0
    %v1107 = vmax.f32 %v1099, 0.0
    %v1108 = vmax.f32 %v1100, 0.0
    %v1109 = vmax.f32 %v1101, 0.0
    %v1110 = vmax.f32 %v1102, 0.0
    %v1111 = vmax.f32 %v1103, 0.0
    %1112 = vst [vmem:[#allocation2] sm:$0xff] %v1104
    %1113 = vst [vmem:[#allocation2 + $0x8] sm:$0xff] %v1105
    %1114 = vst [vmem:[#allocation2 + $0x10] sm:$0xff] %v1106
    %1115 = vst [vmem:[#allocation2 + $0x18] sm:$0xff] %v1107
    %1116 = vst [vmem:[#allocation2 + $0x20] sm:$0xff] %v1108
    %1117 = vst [vmem:[#allocation2 + $0x28] sm:$0xff] %v1109
    %1118 = vst [vmem:[#allocation2 + $0x30] sm:$0xff] %v1110
    %1119 = vst [vmem:[#allocation2 + $0x38] sm:$0xff] %v1111
    // Predicated region
    $region38: #{tpu_custom_call.1} parent=1 // pred_check
      _
    $region39: #{tpu_custom_call.1} parent=1 // pred_check_branch
      %1121 = sbr.rel (0) target = $region41
    $region40: #{tpu_custom_call.1} parent=1 // pred_region
      %s1123 = ssub.s32 1024, 1024
      %1124 = vsyncadd [#allocation3], %s1123
      %s1125 = sshll.u32 [#allocation2], 4
      %s1126 = int_to_ptr.vmem [resolvable:$true] %s1125
      %1131 = dma.vmem_to_hbm [thread:$0]  %s1126, 1024, %s9, [#allocation3], 128, 128, 8
    $region41: #{tpu_custom_call.1} parent=1 // pred_fallthru
      _
    // Predicated region
    $region42: #{tpu_custom_call.1} parent=1 // pred_check
      _
    $region43: #{tpu_custom_call.1} parent=1 // pred_check_branch
      %1133 = sbr.rel (0) target = $region45
    $region44: #{tpu_custom_call.1} parent=1 // pred_region
      %1134 = dma.done [#allocation3], 1024
    $region45: #{tpu_custom_call.1} parent=1 // pred_fallthru
      _
    %1135 = vsyncpa [#allocation3], 1

</llo_original>
